<compile_context>
chip_gen: v7x
topology: tpu7x:2x2x1
jax: 0.10.0
libtpu: 0.0.40
codegen_flags: <defaults>
</compile_context>

<pallas_src>
import math

import jax
import jax.numpy as jnp
from jax.experimental import pallas as pl
from jax.experimental.pallas import tpu as pltpu

_LANE = 128


def _round_up(x, m):
    return ((x + m - 1) // m) * m


def _vmem_capacity_bytes():
    """Physical per-core VMEM; conservative 64 MiB (v7x-sized) fallback."""
    try:
        cap = int(pltpu.get_tpu_info().vmem_capacity_bytes)
        if cap > 0:
            return cap
    except Exception:
        pass
    return 64 * 2 ** 20


def _choose_row_tile(n_pad, footprint, cap, prefer_even_extent):
    """Largest row tile from {1024,512,256,128} dividing n_pad that fits cap.

    On 2-TensorCore parts prefer a tile whose grid extent is even and >= 2 so
    the 'parallel' vertex axis splits evenly across cores."""
    cands = [t for t in (1024, 512, 256, 128) if n_pad % t == 0 and t <= n_pad]
    if not cands:
        return n_pad
    fitting = [t for t in cands if footprint(t) <= cap] or [cands[-1]]
    if prefer_even_extent:
        even = [t for t in fitting
                if (n_pad // t) >= 2 and (n_pad // t) % 2 == 0]
        if even:
            return even[0]
    return fitting[0]


def _accumulate(o_ref, y, k, K):
    # K-step accumulation into the resident output tile; ReLU fused into the
    # final step so every grid step does exactly one store pass over o_ref.
    if K == 1:
        o_ref[...] = jnp.maximum(y, 0.0)
        return

    @pl.when(k == 0)
    def _():
        o_ref[...] = y

    @pl.when(jnp.logical_and(k > 0, k < K - 1))
    def _():
        o_ref[...] += y

    @pl.when(k == K - 1)
    def _():
        o_ref[...] = jnp.maximum(o_ref[...] + y, 0.0)


def _make_theta_kernel(K):
    def kernel(chebT_ref, x2_ref, theta_ref, o_ref):
        # chebT_ref: (1, tm, N_pad)        row tile of T_k^T (pre-transposed)
        # x2_ref:    (N_pad, B*F_in)       batch-fused features, resident
        # theta_ref: (K, B*F_in, BFo_pad)  block-diagonal Theta, resident
        # o_ref:     (tm, BFo_pad)         f32 output tile, resident across K
        k = pl.program_id(1)
        # Heavy matmul: contraction depth N_pad, output width B*F_in.
        rhs = jnp.dot(chebT_ref[0], x2_ref[...],
                      preferred_element_type=jnp.float32)            # (tm, B*F_in)
        # Cheap theta stage: single lane-aligned matmul vs. block-diag Theta_k.
        theta_k = theta_ref[k]                                        # (B*F_in, BFo_pad)
        y = jnp.dot(rhs.astype(theta_k.dtype), theta_k,
                    preferred_element_type=jnp.float32)               # (tm, BFo_pad)
        _accumulate(o_ref, y, k, K)
    return kernel


def _make_z_kernel(K):
    def kernel(chebT_ref, z2_ref, o_ref):
        # chebT_ref: (1, tm, N_pad)        row tile of T_k^T
        # z2_ref:    (K, N_pad, BFo_pad)   z_k = x @ Theta_k (batch-fused), resident
        # o_ref:     (tm, BFo_pad)         f32 output tile, resident across K
        k = pl.program_id(1)
        y = jnp.dot(chebT_ref[0], z2_ref[k],
                    preferred_element_type=jnp.float32)               # (tm, BFo_pad)
        _accumulate(o_ref, y, k, K)
    return kernel


def cheb_conv_forward(x, cheb_polys, theta, *, compute_dtype=jnp.bfloat16,
                      cheb_buffers=2):
    """
    x:          (B, N, F_in)      float32
    cheb_polys: (K, N, N)         float32
    theta:      (K, F_in, F_out)  float32
    returns:    (B, N, F_out)     float32
    """
    B, N, F_in = x.shape
    K = cheb_polys.shape[0]
    F_out = theta.shape[-1]

    itemsize = jnp.dtype(compute_dtype).itemsize
    n_pad = _round_up(max(N, _LANE), _LANE)
    bfi = B * F_in
    bfo = B * F_out
    bfo_pad = _round_up(bfo, _LANE)

    physical = _vmem_capacity_bytes()
    cap = int(physical * 0.85)                  # leave compiler-scratch headroom
    prefer_even = physical <= 64 * 2 ** 20      # 2-TensorCore (v7x-like) heuristic

    # One-time layout plumbing OUTSIDE the kernel: pre-transpose + zero-pad T_k,
    # fuse the batch into the lane dimension of the right operand / output slab.
    chebT = jnp.transpose(cheb_polys, (0, 2, 1)).astype(compute_dtype)   # T_k^T
    chebT = jnp.pad(chebT, ((0, 0), (0, n_pad - N), (0, n_pad - N)))

    # When F_out < F_in, applying Theta first shrinks the heavy-matmul width
    # from B*F_in to B*F_out; the resident right operand grows K x, so only
    # take this path if it fits the VMEM budget even at the smallest tile.
    use_z_path = (F_out < F_in) and (
        K * n_pad * bfo_pad * itemsize
        + cheb_buffers * 128 * n_pad * itemsize
        + 2 * 128 * bfo_pad * 4) <= cap

    if use_z_path:
        z = jnp.einsum("bnf,kfo->knbo", x.astype(jnp.float32),
                       theta.astype(jnp.float32))                    # (K,N,B,F_out)
        z2 = z.reshape(K, N, bfo).astype(compute_dtype)
        z2 = jnp.pad(z2, ((0, 0), (0, n_pad - N), (0, bfo_pad - bfo)))

        def footprint(tm):
            return (cheb_buffers * tm * n_pad * itemsize      # T row tiles
                    + K * n_pad * bfo_pad * itemsize          # z2, resident (1 buf)
                    + 2 * tm * bfo_pad * 4)                   # f32 output tile

        tm = _choose_row_tile(n_pad, footprint, cap, prefer_even)
        grid = (n_pad // tm, K)

        out2 = pl.pallas_call(
            _make_z_kernel(K),
            out_shape=jax.ShapeDtypeStruct((n_pad, bfo_pad), jnp.float32),
            grid_spec=pltpu.PrefetchScalarGridSpec(
                num_scalar_prefetch=0,
                grid=grid,
                in_specs=[
                    pl.BlockSpec((1, tm, n_pad), lambda i, k: (k, i, 0),
                                 pipeline_mode=pl.Buffered(cheb_buffers)),
                    pl.BlockSpec((K, n_pad, bfo_pad), lambda i, k: (0, 0, 0),
                                 pipeline_mode=pl.Buffered(1)),
                ],
                out_specs=pl.BlockSpec((tm, bfo_pad), lambda i, k: (i, 0)),
            ),
            compiler_params=pltpu.CompilerParams(
                dimension_semantics=("parallel", "arbitrary"),
                vmem_limit_bytes=int(min(max(cap, footprint(tm) + (8 << 20)),
                                         physical)),
            ),
        )(chebT, z2)
    else:
        x2 = jnp.transpose(x, (1, 0, 2)).reshape(N, bfi).astype(compute_dtype)
        x2 = jnp.pad(x2, ((0, n_pad - N), (0, 0)))                   # (N_pad, B*F_in)

        # Block-diagonal Theta: one (tm, B*F_in) @ (B*F_in, BFo_pad) matmul
        # replaces B tiny depth-F_in dots + concatenate.
        theta_bd = jnp.einsum("bc,kfo->kbfco",
                              jnp.eye(B, dtype=theta.dtype),
                              theta).reshape(K, bfi, bfo)
        theta_bd = jnp.pad(theta_bd, ((0, 0), (0, 0), (0, bfo_pad - bfo)))
        theta_bd = theta_bd.astype(compute_dtype)                    # (K, B*F_in, BFo_pad)

        def footprint(tm):
            return (cheb_buffers * tm * n_pad * itemsize      # T row tiles
                    + n_pad * bfi * itemsize                  # x2, resident (1 buf)
                    + K * bfi * bfo_pad * itemsize            # theta, resident (1 buf)
                    + 2 * tm * bfo_pad * 4)                   # f32 output tile

        tm = _choose_row_tile(n_pad, footprint, cap, prefer_even)
        grid = (n_pad // tm, K)

        out2 = pl.pallas_call(
            _make_theta_kernel(K),
            out_shape=jax.ShapeDtypeStruct((n_pad, bfo_pad), jnp.float32),
            grid_spec=pltpu.PrefetchScalarGridSpec(
                num_scalar_prefetch=0,
                grid=grid,
                in_specs=[
                    pl.BlockSpec((1, tm, n_pad), lambda i, k: (k, i, 0),
                                 pipeline_mode=pl.Buffered(cheb_buffers)),
                    pl.BlockSpec((n_pad, bfi), lambda i, k: (0, 0),
                                 pipeline_mode=pl.Buffered(1)),
                    pl.BlockSpec((K, bfi, bfo_pad), lambda i, k: (0, 0, 0),
                                 pipeline_mode=pl.Buffered(1)),
                ],
                out_specs=pl.BlockSpec((tm, bfo_pad), lambda i, k: (i, 0)),
            ),
            compiler_params=pltpu.CompilerParams(
                dimension_semantics=("parallel", "arbitrary"),
                vmem_limit_bytes=int(min(max(cap, footprint(tm) + (8 << 20)),
                                         physical)),
            ),
        )(chebT, x2, theta_bd)

    # (N_pad, BFo_pad) -> (B, N, F_out); strip zero padding.
    out = out2[:N, :bfo].reshape(N, B, F_out)
    return jnp.transpose(out, (1, 0, 2))


def make_cheb_polynomials(key, K, N):
    """Build K Chebyshev polynomials of a scaled, symmetric Laplacian-like
    matrix (deterministic, in-script; mirrors what the module receives)."""
    a = jax.random.uniform(key, (N, N), dtype=jnp.float32)
    w = 0.5 * (a + a.T)
    w = w - jnp.diag(jnp.diag(w))
    d = jnp.diag(jnp.sum(w, axis=1))
    lap = d - w
    lmax = jnp.max(jnp.sum(jnp.abs(lap), axis=1))  # Gershgorin bound
    L = 2.0 * lap / lmax - jnp.eye(N, dtype=jnp.float32)

    polys = [jnp.eye(N, dtype=jnp.float32), L]
    for _ in range(2, K):
        polys.append(2.0 * L @ polys[-1] - polys[-2])
    return jnp.stack(polys[:K], axis=0)  # (K, N, N)


def init_theta(key, K, in_channels, out_channels):
    """Deterministic kaiming_uniform-style init for Theta (K, F_in, F_out)."""
    bound = math.sqrt(6.0 / out_channels)
    return jax.random.uniform(
        key, (K, in_channels, out_channels),
        minval=-bound, maxval=bound, dtype=jnp.float32,
    )


def reference_cheb_conv(x, cheb_polys, theta):
    # Pure-JAX reference mirroring the PyTorch forward.
    K = cheb_polys.shape[0]
    out = jnp.zeros((x.shape[0], x.shape[1], theta.shape[-1]), jnp.float32)
    for k in range(K):
        rhs = jnp.einsum("bjf,ji->bif", x, cheb_polys[k])
        out = out + jnp.einsum("bif,fo->bio", rhs, theta[k])
    return jnp.maximum(out, 0.0)


if __name__ == "__main__":
    key = jax.random.PRNGKey(0)
    k_x, k_cheb, k_theta, k_x2, k_th2 = jax.random.split(key, 5)

    # --- Path 1: F_in <= F_out (block-diagonal Theta stage in-kernel) ---
    B, N, F_in, F_out, K = 2, 16, 8, 16, 3
    x = jax.random.normal(k_x, (B, N, F_in), dtype=jnp.float32)
    cheb_polys = make_cheb_polynomials(k_cheb, K, N)          # (K, N, N)
    theta = init_theta(k_theta, K, F_in, F_out)               # (K, F_in, F_out)
    ref = reference_cheb_conv(x, cheb_polys, theta)

    out_f32 = jax.block_until_ready(
        cheb_conv_forward(x, cheb_polys, theta, compute_dtype=jnp.float32))
    assert out_f32.shape == (B, N, F_out)
    assert jnp.allclose(out_f32, ref, atol=1e-4, rtol=1e-4)

    # bf16 operand / f32 accumulation default path, loose check.
    out_bf16 = jax.block_until_ready(cheb_conv_forward(x, cheb_polys, theta))
    assert out_bf16.shape == (B, N, F_out)
    assert jnp.allclose(out_bf16, ref, atol=1e-1, rtol=1e-1)

    # --- Path 2: F_out < F_in (Theta pre-applied; kernel does T matmuls only) ---
    B2, N2, F_in2, F_out2, K2 = 2, 24, 16, 8, 3
    x_b = jax.random.normal(k_x2, (B2, N2, F_in2), dtype=jnp.float32)
    cheb_b = make_cheb_polynomials(k_cheb, K2, N2)
    theta_b = init_theta(k_th2, K2, F_in2, F_out2)
    ref_b = reference_cheb_conv(x_b, cheb_b, theta_b)

    out_b = jax.block_until_ready(
        cheb_conv_forward(x_b, cheb_b, theta_b, compute_dtype=jnp.float32))
    assert out_b.shape == (B2, N2, F_out2)
    assert jnp.allclose(out_b, ref_b, atol=1e-4, rtol=1e-4)

    print("KERNEL_OK")
</pallas_src>

<mosaic_0001>
module attributes {stable_mosaic.version = 11 : i64} {
  func.func @kernel(%arg0: i32, %arg1: i32, %arg2: memref<1x128x128xf32, #tpu.memory_space<vmem>>, %arg3: memref<128x16xf32, #tpu.memory_space<vmem>>, %arg4: memref<3x16x128xf32, #tpu.memory_space<vmem>>, %arg5: memref<128x128xf32, #tpu.memory_space<vmem>>) attributes {dimension_semantics = [#tpu.dimension_semantics<parallel>, #tpu.dimension_semantics<arbitrary>], iteration_bounds = array<i64: 1, 3>, scalar_prefetch = 0 : i64, scratch_operands = 0 : i64, tpu.core_type = #tpu.core_type<tc>, window_params = [{pipeline_mode = #tpu.pipeline_mode<double_buffered>, transform_indices = @transform_0, window_bounds = array<i64: 1, 128, 128>}, {pipeline_mode = #tpu.pipeline_mode<synchronous>, transform_indices = @transform_1, window_bounds = array<i64: 128, 16>}, {pipeline_mode = #tpu.pipeline_mode<synchronous>, transform_indices = @transform_2, window_bounds = array<i64: 3, 16, 128>}, {transform_indices = @transform_3, window_bounds = array<i64: 128, 128>}]} {
    %c0 = arith.constant 0 : index
    %c0_0 = arith.constant 0 : index
    %c0_1 = arith.constant 0 : index
    %0 = vector.load %arg2[%c0, %c0_0, %c0_1] : memref<1x128x128xf32, #tpu.memory_space<vmem>>, vector<1x128x128xf32>
    %1 = vector.shape_cast %0 : vector<1x128x128xf32> to vector<128x128xf32>
    %c0_2 = arith.constant 0 : index
    %c0_3 = arith.constant 0 : index
    %2 = vector.load %arg3[%c0_2, %c0_3] : memref<128x16xf32, #tpu.memory_space<vmem>>, vector<128x16xf32>
    %cst = arith.constant dense<0.000000e+00> : vector<128x16xf32>
    %3 = tpu.matmul %1, %2, %cst {dimension_numbers = #tpu.dot_dimension_numbers<[1], [0], [0], [1], [0, 0, 1, 1], [], []>} : vector<128x128xf32>, vector<128x16xf32>, vector<128x16xf32> -> vector<128x16xf32>
    %4 = arith.index_cast %arg1 : i32 to index
    %c0_4 = arith.constant 0 : index
    %c0_5 = arith.constant 0 : index
    %5 = vector.load %arg4[%4, %c0_4, %c0_5] : memref<3x16x128xf32, #tpu.memory_space<vmem>>, vector<1x16x128xf32>
    %6 = vector.shape_cast %5 : vector<1x16x128xf32> to vector<16x128xf32>
    %cst_6 = arith.constant dense<0.000000e+00> : vector<128x128xf32>
    %7 = tpu.matmul %3, %6, %cst_6 {dimension_numbers = #tpu.dot_dimension_numbers<[1], [0], [0], [1], [0, 0, 1, 1], [], []>} : vector<128x16xf32>, vector<16x128xf32>, vector<128x128xf32> -> vector<128x128xf32>
    %c0_i32 = arith.constant 0 : i32
    %8 = arith.cmpi eq, %arg1, %c0_i32 : i32
    %9 = arith.extui %8 : i1 to i32
    %c0_i32_7 = arith.constant 0 : i32
    %10 = arith.cmpi ne, %9, %c0_i32_7 : i32
    scf.if %10 {
      %c0_12 = arith.constant 0 : index
      %c0_13 = arith.constant 0 : index
      %19 = vector.load %arg5[%c0_12, %c0_13] : memref<128x128xf32, #tpu.memory_space<vmem>>, vector<128x128xf32>
      tpu.vector_store %arg5[%c0_12, %c0_13], %7 {strides = array<i32>} : memref<128x128xf32, #tpu.memory_space<vmem>>, vector<128x128xf32>,
    } else {
    }
    %c0_i32_8 = arith.constant 0 : i32
    %11 = arith.cmpi sgt, %arg1, %c0_i32_8 : i32
    %c2_i32 = arith.constant 2 : i32
    %12 = arith.cmpi slt, %arg1, %c2_i32 : i32
    %13 = arith.andi %11, %12 : i1
    %14 = arith.extui %13 : i1 to i32
    %c0_i32_9 = arith.constant 0 : i32
    %15 = arith.cmpi ne, %14, %c0_i32_9 : i32
    scf.if %15 {
      %c0_12 = arith.constant 0 : index
      %c0_13 = arith.constant 0 : index
      %19 = vector.load %arg5[%c0_12, %c0_13] : memref<128x128xf32, #tpu.memory_space<vmem>>, vector<128x128xf32>
      %20 = arith.addf %19, %7 : vector<128x128xf32>
      %c0_14 = arith.constant 0 : index
      %c0_15 = arith.constant 0 : index
      %21 = vector.load %arg5[%c0_14, %c0_15] : memref<128x128xf32, #tpu.memory_space<vmem>>, vector<128x128xf32>
      tpu.vector_store %arg5[%c0_14, %c0_15], %20 {strides = array<i32>} : memref<128x128xf32, #tpu.memory_space<vmem>>, vector<128x128xf32>,
    } else {
    }
    %c2_i32_10 = arith.constant 2 : i32
    %16 = arith.cmpi eq, %arg1, %c2_i32_10 : i32
    %17 = arith.extui %16 : i1 to i32
    %c0_i32_11 = arith.constant 0 : i32
    %18 = arith.cmpi ne, %17, %c0_i32_11 : i32
    scf.if %18 {
      %c0_12 = arith.constant 0 : index
      %c0_13 = arith.constant 0 : index
      %19 = vector.load %arg5[%c0_12, %c0_13] : memref<128x128xf32, #tpu.memory_space<vmem>>, vector<128x128xf32>
      %20 = arith.addf %19, %7 : vector<128x128xf32>
      %cst_14 = arith.constant 0.000000e+00 : f32
      %21 = vector.broadcast %cst_14 : f32 to vector<128x128xf32>
      %22 = arith.maximumf %20, %21 : vector<128x128xf32>
      %c0_15 = arith.constant 0 : index
      %c0_16 = arith.constant 0 : index
      %23 = vector.load %arg5[%c0_15, %c0_16] : memref<128x128xf32, #tpu.memory_space<vmem>>, vector<128x128xf32>
      tpu.vector_store %arg5[%c0_15, %c0_16], %22 {strides = array<i32>} : memref<128x128xf32, #tpu.memory_space<vmem>>, vector<128x128xf32>,
    } else {
    }
    return
  }
  func.func @transform_0(%arg0: i32, %arg1: i32) -> (i32, i32, i32) {
    %c0_i32 = arith.constant 0 : i32
    %c0_i32_0 = arith.constant 0 : i32
    return %arg1, %arg0, %c0_i32 : i32, i32, i32
  }
  func.func @transform_1(%arg0: i32, %arg1: i32) -> (i32, i32) {
    %c0_i32 = arith.constant 0 : i32
    %c0_i32_0 = arith.constant 0 : i32
    %c0_i32_1 = arith.constant 0 : i32
    return %c0_i32, %c0_i32_0 : i32, i32
  }
  func.func @transform_2(%arg0: i32, %arg1: i32) -> (i32, i32, i32) {
    %c0_i32 = arith.constant 0 : i32
    %c0_i32_0 = arith.constant 0 : i32
    %c0_i32_1 = arith.constant 0 : i32
    %c0_i32_2 = arith.constant 0 : i32
    return %c0_i32, %c0_i32_0, %c0_i32_1 : i32, i32, i32
  }
  func.func @transform_3(%arg0: i32, %arg1: i32) -> (i32, i32) {
    %c0_i32 = arith.constant 0 : i32
    %c0_i32_0 = arith.constant 0 : i32
    return %arg0, %c0_i32 : i32, i32
  }
}

</mosaic_0001>

<llo_original>
// kernel: tpu_custom_call.1
$region0: #{tpu_custom_call.1}
  #allocation0 [shape = 'u32[]', space=smem, size = 0x4, offset = 0x4, fixed_abs, tag = 'smem constant byte address 0x4 - core index']
  #allocation1 [shape = 'u32[144,128]{1,0:T(1,128)}', space=vmem, size = 0x12000, scoped, tag = 'internal scratch']
  %s0 = inlined_call_operand.hbm [shape: f32[3,128,128], index: 0, kind: input, shape index: {}]
  %s1 = inlined_call_operand.vmem [shape: f32[128,16], index: 1, kind: input, shape index: {}]
  %s2 = inlined_call_operand.vmem [shape: f32[3,16,128], index: 2, kind: input, shape index: {}]
  %s3 = inlined_call_operand.hbm [shape: f32[128,128], index: 3, kind: output, shape index: {}]
  %s4 = sld [smem:[#allocation0]]
  $region61: #{tpu_custom_call.1} parent=0
    _
  %s6 = ssub.s32 1, %s4
  %s7 = scalar_select 0, %s6, %s4
  $region1: #{tpu_custom_call.1} parent=0
    #allocation2 [shape = 'u8[131072]{0}', space=vmem, size = 0x20000, scoped, tag = 'input window, operand 0']
    #allocation3 [shape = 's32[2]{0}', space=sflag, size = 0x8, scoped, tag = 'scoped memory for tpu_custom_call.1']
    #allocation4 [shape = 's32[2]{0}', space=sflag, size = 0x8, scoped, tag = 'scoped memory for tpu_custom_call.1']
    #allocation5 [shape = 'u8[65536]{0}', space=vmem, size = 0x10000, scoped, tag = 'output window, operand 0, single buffered']
    %8 = vsyncpa [#allocation3], 0
    %s9 = scalar_lea.sflag [#allocation3], 1
    %10 = vsyncpa %s9, 0
    %11 = vsyncpa [#allocation4], 0
    loop: start=0, step=1, limit=5
    $region2: #{tpu_custom_call.1} parent=1 // loop_pre_header
      _
    $region3: #{tpu_custom_call.1} parent=1 // loop_header
      %s13 = sphi 0, %s17
      %p14 = scmp.ge.s32.totalorder %s13, 5
      %s20 = sphi 0, %s32
      %s21 = sphi 0, %s28
      %s22 = sphi 0, %s20
      %s23 = sphi 0, %s21
      %s24 = sphi 0, %s22
      %s25 = sphi 0, %s23
      %s37 = sphi 0, %s39
      %s40 = sphi 0, %s37
      %s41 = sphi 0, %s40
      %s57 = sphi 0, %s41
      %s61 = sphi 0, %s61
      %s63 = sphi 0, %s61
      %s64 = sphi 0, %s63
      %s78 = sphi 0, %s64
      %s82 = sphi 0, %s82
      %s84 = sphi 0, %s82
      %s85 = sphi 0, %s84
      %s99 = sphi 0, %s85
      %s105 = sphi 0, %s107
      %s108 = sphi 0, %s105
      %s109 = sphi 0, %s108
      %s125 = sphi 0, %s109
    $region4: #{tpu_custom_call.1} parent=1 // loop_header_branch
      %16 = sbr.rel (%p14) target = $region8
    $region5: #{tpu_custom_call.1} parent=1 // loop_body
      %s18 = ssub.s32 %s13, 1
      %s19 = ssub.s32 %s13, 2
      %s26 = sadd.s32 1, %s21
      %p27 = scmp.ge.s32.totalorder %s26, 3
      %s28 = scalar_select %p27, 0, %s26
      %s29 = sadd.s32 1, %s20
      %s30 = scalar_select %p27, %s29, %s20
      %p31 = scmp.ge.s32.totalorder %s30, 1
      %s32 = scalar_select %p31, 0, %s30
      %s33 = ssub.s32 %s21, %s28
      %s34 = ssub.s32 %s20, %s32
      %s35 = sor.u32 %s33, %s34
      %p36 = scmp.eq.s32.totalorder %s35, 0
      %s38 = sadd.s32 %s37, 1
      %s39 = scalar_select %p36, %s37, %s38
      %p42 = pneg %p36
      %p43 = scmp.eq.s32.totalorder %s13, 2
      %p44 = por %p42, %p43
      %p45 = scmp.ne.s32.totalorder %s37, %s40
      %p46 = scmp.eq.s32.totalorder %s13, 0
      %p47 = por %p45, %p46
      %p48 = scmp.ne.s32.totalorder %s37, %s40
      %p49 = scmp.eq.s32.totalorder %s18, 2
      %p50 = por %p48, %p49
      %p51 = scmp.ne.s32.totalorder %s40, %s41
      %p52 = scmp.eq.s32.totalorder %s18, 0
      %p53 = por %p51, %p52
      %p54 = scmp.ne.s32.totalorder %s40, %s41
      %p55 = scmp.eq.s32.totalorder %s19, 2
      %p56 = por %p54, %p55
      %p58 = scmp.ne.s32.totalorder %s41, %s57
      %p59 = scmp.eq.s32.totalorder %s19, 0
      %p60 = por %p58, %p59
      %s62 = sadd.s32 %s61, 1
      %p65 = scmp.eq.s32.totalorder %s13, 2
      %p66 = scmp.ne.s32.totalorder %s61, %s63
      %p67 = scmp.eq.s32.totalorder %s13, 0
      %p68 = por %p66, %p67
      %p69 = scmp.ne.s32.totalorder %s61, %s63
      %p70 = scmp.eq.s32.totalorder %s18, 2
      %p71 = por %p69, %p70
      %p72 = scmp.ne.s32.totalorder %s63, %s64
      %p73 = scmp.eq.s32.totalorder %s18, 0
      %p74 = por %p72, %p73
      %p75 = scmp.ne.s32.totalorder %s63, %s64
      %p76 = scmp.eq.s32.totalorder %s19, 2
      %p77 = por %p75, %p76
      %p79 = scmp.ne.s32.totalorder %s64, %s78
      %p80 = scmp.eq.s32.totalorder %s19, 0
      %p81 = por %p79, %p80
      %s83 = sadd.s32 %s82, 1
      %p86 = scmp.eq.s32.totalorder %s13, 2
      %p87 = scmp.ne.s32.totalorder %s82, %s84
      %p88 = scmp.eq.s32.totalorder %s13, 0
      %p89 = por %p87, %p88
      %p90 = scmp.ne.s32.totalorder %s82, %s84
      %p91 = scmp.eq.s32.totalorder %s18, 2
      %p92 = por %p90, %p91
      %p93 = scmp.ne.s32.totalorder %s84, %s85
      %p94 = scmp.eq.s32.totalorder %s18, 0
      %p95 = por %p93, %p94
      %p96 = scmp.ne.s32.totalorder %s84, %s85
      %p97 = scmp.eq.s32.totalorder %s19, 2
      %p98 = por %p96, %p97
      %p100 = scmp.ne.s32.totalorder %s85, %s99
      %p101 = scmp.eq.s32.totalorder %s19, 0
      %p102 = por %p100, %p101
      %s103 = ssub.s32 %s20, %s32
      %p104 = scmp.eq.s32.totalorder %s103, 0
      %s106 = sadd.s32 %s105, 1
      %s107 = scalar_select %p104, %s105, %s106
      %p110 = pneg %p104
      %p111 = scmp.eq.s32.totalorder %s13, 2
      %p112 = por %p110, %p111
      %p113 = scmp.ne.s32.totalorder %s105, %s108
      %p114 = scmp.eq.s32.totalorder %s13, 0
      %p115 = por %p113, %p114
      %p116 = scmp.ne.s32.totalorder %s105, %s108
      %p117 = scmp.eq.s32.totalorder %s18, 2
      %p118 = por %p116, %p117
      %p119 = scmp.ne.s32.totalorder %s108, %s109
      %p120 = scmp.eq.s32.totalorder %s18, 0
      %p121 = por %p119, %p120
      %p122 = scmp.ne.s32.totalorder %s108, %s109
      %p123 = scmp.eq.s32.totalorder %s19, 2
      %p124 = por %p122, %p123
      %p126 = scmp.ne.s32.totalorder %s109, %s125
      %p127 = scmp.eq.s32.totalorder %s19, 0
      %p128 = por %p126, %p127
      %p129 = scmp.le.s32.totalorder 1, %s13
      %p130 = scmp.lt.s32.totalorder %s13, 4
      %p131 = pnand %p129, %p130
      %p132 = pneg %p131
      // Predicated region
      $region9: #{tpu_custom_call.1} parent=5 // pred_check
        _
      $region10: #{tpu_custom_call.1} parent=5 // pred_check_branch
        %134 = sbr.rel (%p131) target = $region12
      $region11: #{tpu_custom_call.1} parent=5 // pred_region
        %s135 = ssub.s32 %s13, 1
        // Predicated region
        $region13: #{tpu_custom_call.1} parent=11 // pred_check
          %p136 = pneg %p74
        $region14: #{tpu_custom_call.1} parent=11 // pred_check_branch
          %138 = sbr.rel (%p136) target = $region16
        $region15: #{tpu_custom_call.1} parent=11 // pred_region
          _
        $region16: #{tpu_custom_call.1} parent=11 // pred_fallthru
          _
        // Predicated region
        $region17: #{tpu_custom_call.1} parent=11 // pred_check
          %p139 = pneg %p95
        $region18: #{tpu_custom_call.1} parent=11 // pred_check_branch
          %141 = sbr.rel (%p139) target = $region20
        $region19: #{tpu_custom_call.1} parent=11 // pred_region
          _
        $region20: #{tpu_custom_call.1} parent=11 // pred_fallthru
          _
      $region12: #{tpu_custom_call.1} parent=5 // pred_fallthru
        _
      %p142 = scmp.lt.s32.totalorder %s13, 3
      // Predicated region
      $region21: #{tpu_custom_call.1} parent=5 // pred_check
        %p143 = pneg %p142
      $region22: #{tpu_custom_call.1} parent=5 // pred_check_branch
        %145 = sbr.rel (%p143) target = $region24
      $region23: #{tpu_custom_call.1} parent=5 // pred_region
        // Predicated region
        $region25: #{tpu_custom_call.1} parent=23 // pred_check
          %p146 = pneg %p47
        $region26: #{tpu_custom_call.1} parent=23 // pred_check_branch
          %148 = sbr.rel (%p146) target = $region28
        $region27: #{tpu_custom_call.1} parent=23 // pred_region
          %s149 = sand.u32 %s37, 1
          %s150 = scalar_lea.sflag [#allocation3], %s149
          %s151 = sand.u32 %s37, 1
          %s152 = smul.addr %s151, 128
          %s153 = scalar_lea.vmem [#allocation2], %s152
          %s154 = smul.u32 16, %s20
          %s156 = ssub.s32 2048, 2048
          %157 = vsyncadd %s150, %s156
          %s158 = smul.addr %s21, 16
          %s159 = sadd.s32 %s154, %s158
          %s160 = smul.addr %s159, 128
          %s161 = scalar_lea.hbm %s0, %s160
          %s162 = sshll.u32 %s153, 4
          %s163 = int_to_ptr.vmem [resolvable:$true] %s162
          %168 = dma.hbm_to_vmem [thread:$0]  %s161, 2048, %s163, %s150, 128, 128, 8
        $region28: #{tpu_custom_call.1} parent=23 // pred_fallthru
          _
      $region24: #{tpu_custom_call.1} parent=5 // pred_fallthru
        _
      %p169 = scmp.le.s32.totalorder 1, %s13
      %p170 = scmp.lt.s32.totalorder %s13, 4
      %p171 = pnand %p169, %p170
      %p172 = pneg %p171
      // Predicated region
      $region29: #{tpu_custom_call.1} parent=5 // pred_check
        _
      $region30: #{tpu_custom_call.1} parent=5 // pred_check_branch
        %174 = sbr.rel (%p171) target = $region32
      $region31: #{tpu_custom_call.1} parent=5 // pred_region
        %s175 = ssub.s32 %s13, 1
        %s176 = sand.u32 %s40, 1
        %s177 = scalar_lea.sflag [#allocation3], %s176
        %s178 = sand.u32 %s40, 1
        %s179 = smul.addr %s178, 128
        %s180 = scalar_lea.vmem [#allocation2], %s179
        // Predicated region
        $region33: #{tpu_custom_call.1} parent=31 // pred_check
          %p181 = pneg %p53
        $region34: #{tpu_custom_call.1} parent=31 // pred_check_branch
          %183 = sbr.rel (%p181) target = $region36
        $region35: #{tpu_custom_call.1} parent=31 // pred_region
          %184 = dma.done %s177, 2048
        $region36: #{tpu_custom_call.1} parent=31 // pred_fallthru
          _
        %s185 = sand.u32 %s40, 1
        %s186 = scalar_lea.sflag [#allocation3], %s185
        %s187 = sand.u32 %s40, 1
        %s188 = smul.addr %s187, 128
        %s189 = scalar_lea.vmem [#allocation2], %s188
        %p190 = pneg %p53
        %p191 = pneg %p50
        %p192 = pneg %p74
        %p193 = pneg %p71
        %p194 = pneg %p95
        %p195 = pneg %p92
        %p196 = pneg %p121
        %p197 = pneg %p118
        %s198 = smul.u32 16, %s22
        %s199 = smul.u32 16, %s22
        %v200 = vld [vmem:[%s180] sm:$0xff]
        %v201 = vld [vmem:[%s180 + $0x8] sm:$0xff]
        %v202 = vld [vmem:[%s180 + $0x10] sm:$0xff]
        %v203 = vld [vmem:[%s180 + $0x18] sm:$0xff]
        %v204 = vld [vmem:[%s180 + $0x20] sm:$0xff]
        %v205 = vld [vmem:[%s180 + $0x28] sm:$0xff]
        %v206 = vld [vmem:[%s180 + $0x30] sm:$0xff]
        %v207 = vld [vmem:[%s180 + $0x38] sm:$0xff]
        %v208 = vld [vmem:[%s180 + $0x40] sm:$0xff]
        %v209 = vld [vmem:[%s180 + $0x48] sm:$0xff]
        %v210 = vld [vmem:[%s180 + $0x50] sm:$0xff]
        %v211 = vld [vmem:[%s180 + $0x58] sm:$0xff]
        %v212 = vld [vmem:[%s180 + $0x60] sm:$0xff]
        %v213 = vld [vmem:[%s180 + $0x68] sm:$0xff]
        %v214 = vld [vmem:[%s180 + $0x70] sm:$0xff]
        %v215 = vld [vmem:[%s180 + $0x78] sm:$0xff]
        %v216 = vld [vmem:[%s1] sm:$0xff]
        %v217 = vld [vmem:[%s1 + $0x8] sm:$0xff]
        %v218 = vld [vmem:[%s1 + $0x10] sm:$0xff]
        %v219 = vld [vmem:[%s1 + $0x18] sm:$0xff]
        %v220 = vld [vmem:[%s1 + $0x20] sm:$0xff]
        %v221 = vld [vmem:[%s1 + $0x28] sm:$0xff]
        %v222 = vld [vmem:[%s1 + $0x30] sm:$0xff]
        %v223 = vld [vmem:[%s1 + $0x38] sm:$0xff]
        %v224 = vld [vmem:[%s1 + $0x40] sm:$0xff]
        %v225 = vld [vmem:[%s1 + $0x48] sm:$0xff]
        %v226 = vld [vmem:[%s1 + $0x50] sm:$0xff]
        %v227 = vld [vmem:[%s1 + $0x58] sm:$0xff]
        %v228 = vld [vmem:[%s1 + $0x60] sm:$0xff]
        %v229 = vld [vmem:[%s1 + $0x68] sm:$0xff]
        %v230 = vld [vmem:[%s1 + $0x70] sm:$0xff]
        %v231 = vld [vmem:[%s1 + $0x78] sm:$0xff]
        %232 = vmatprep.subr.mxu0 0.0
        %233 = vmatpush1.msra.mxu0 %v216
        %234 = vmatprep.subr.mxu0 0.0
        %235 = vmatpush1.msra.mxu0 %v217
        %236 = vmatprep.subr.mxu0 0.0
        %237 = vmatpush1.msra.mxu0 %v218
        %238 = vmatprep.subr.mxu0 0.0
        %239 = vmatpush1.msra.mxu0 %v219
        %240 = vmatprep.subr.mxu0 0.0
        %241 = vmatpush1.msra.mxu0 %v220
        %242 = vmatprep.subr.mxu0 0.0
        %243 = vmatpush1.msra.mxu0 %v221
        %244 = vmatprep.subr.mxu0 0.0
        %245 = vmatpush1.msra.mxu0 %v222
        %246 = vmatprep.subr.mxu0 0.0
        %247 = vmatpush1.msra.mxu0 %v223
        %248 = vmatprep.subr.mxu0 0.0
        %249 = vmatpush1.msra.mxu0 %v224
        %250 = vmatprep.subr.mxu0 0.0
        %251 = vmatpush1.msra.mxu0 %v225
        %252 = vmatprep.subr.mxu0 0.0
        %253 = vmatpush1.msra.mxu0 %v226
        %254 = vmatprep.subr.mxu0 0.0
        %255 = vmatpush1.msra.mxu0 %v227
        %256 = vmatprep.subr.mxu0 0.0
        %257 = vmatpush1.msra.mxu0 %v228
        %258 = vmatprep.subr.mxu0 0.0
        %259 = vmatpush1.msra.mxu0 %v229
        %260 = vmatprep.subr.mxu0 0.0
        %261 = vmatpush1.msra.mxu0 %v230
        %262 = vmatprep.subr.mxu0 0.0
        %263 = vmatpush1.msra.mxu0 %v231
        %264 = vmatprep.subr.mxu0 0.0
        %265 = vmatpush1.msra.mxu0 0.0
        %266 = vmatprep.subr.mxu0 0.0
        %267 = vmatpush1.msra.mxu0 0.0
        %268 = vmatprep.subr.mxu0 0.0
        %269 = vmatpush1.msra.mxu0 0.0
        %270 = vmatprep.subr.mxu0 0.0
        %271 = vmatpush1.msra.mxu0 0.0
        %272 = vmatprep.subr.mxu0 0.0
        %273 = vmatpush1.msra.mxu0 0.0
        %274 = vmatprep.subr.mxu0 0.0
        %275 = vmatpush1.msra.mxu0 0.0
        %276 = vmatprep.subr.mxu0 0.0
        %277 = vmatpush1.msra.mxu0 0.0
        %278 = vmatprep.subr.mxu0 0.0
        %279 = vmatpush1.msra.mxu0 0.0
        %280 = vmatprep.subr.mxu0 0.0
        %281 = vmatpush1.msra.mxu0 0.0
        %282 = vmatprep.subr.mxu0 0.0
        %283 = vmatpush1.msra.mxu0 0.0
        %284 = vmatprep.subr.mxu0 0.0
        %285 = vmatpush1.msra.mxu0 0.0
        %286 = vmatprep.subr.mxu0 0.0
        %287 = vmatpush1.msra.mxu0 0.0
        %288 = vmatprep.subr.mxu0 0.0
        %289 = vmatpush1.msra.mxu0 0.0
        %290 = vmatprep.subr.mxu0 0.0
        %291 = vmatpush1.msra.mxu0 0.0
        %292 = vmatprep.subr.mxu0 0.0
        %293 = vmatpush1.msra.mxu0 0.0
        %294 = vmatprep.subr.mxu0 0.0
        %295 = vmatpush1.msra.mxu0 0.0
        %296 = vmatprep.mubr.f32.mxu0 0.0
        %297 = vmatmul.mubr.f32.gmra.mrb[0].mxu0 %v200
        %v298 = vpop.f32.mrb[0].mxu0
        %v299 = vadd.f32 0.0, %v298
        %v300 = vpop.f32.mrb[0].mxu0
        %301 = vmatprep.mubr.f32.mxu0 0.0
        %302 = vmatmul.mubr.f32.gmra.mrb[0].mxu0 %v201
        %v303 = vpop.f32.mrb[0].mxu0
        %v304 = vadd.f32 0.0, %v303
        %v305 = vpop.f32.mrb[0].mxu0
        %306 = vmatprep.mubr.f32.mxu0 0.0
        %307 = vmatmul.mubr.f32.gmra.mrb[0].mxu0 %v202
        %v308 = vpop.f32.mrb[0].mxu0
        %v309 = vadd.f32 0.0, %v308
        %v310 = vpop.f32.mrb[0].mxu0
        %311 = vmatprep.mubr.f32.mxu0 0.0
        %312 = vmatmul.mubr.f32.gmra.mrb[0].mxu0 %v203
        %v313 = vpop.f32.mrb[0].mxu0
        %v314 = vadd.f32 0.0, %v313
        %v315 = vpop.f32.mrb[0].mxu0
        %316 = vmatprep.mubr.f32.mxu0 0.0
        %317 = vmatmul.mubr.f32.gmra.mrb[0].mxu0 %v204
        %v318 = vpop.f32.mrb[0].mxu0
        %v319 = vadd.f32 0.0, %v318
        %v320 = vpop.f32.mrb[0].mxu0
        %321 = vmatprep.mubr.f32.mxu0 0.0
        %322 = vmatmul.mubr.f32.gmra.mrb[0].mxu0 %v205
        %v323 = vpop.f32.mrb[0].mxu0
        %v324 = vadd.f32 0.0, %v323
        %v325 = vpop.f32.mrb[0].mxu0
        %326 = vmatprep.mubr.f32.mxu0 0.0
        %327 = vmatmul.mubr.f32.gmra.mrb[0].mxu0 %v206
        %v328 = vpop.f32.mrb[0].mxu0
        %v329 = vadd.f32 0.0, %v328
        %v330 = vpop.f32.mrb[0].mxu0
        %331 = vmatprep.mubr.f32.mxu0 0.0
        %332 = vmatmul.mubr.f32.gmra.mrb[0].mxu0 %v207
        %v333 = vpop.f32.mrb[0].mxu0
        %v334 = vadd.f32 0.0, %v333
        %v335 = vpop.f32.mrb[0].mxu0
        %336 = vmatprep.mubr.f32.mxu0 0.0
        %337 = vmatmul.mubr.f32.gmra.mrb[0].mxu0 %v208
        %v338 = vpop.f32.mrb[0].mxu0
        %v339 = vadd.f32 0.0, %v338
        %v340 = vpop.f32.mrb[0].mxu0
        %341 = vmatprep.mubr.f32.mxu0 0.0
        %342 = vmatmul.mubr.f32.gmra.mrb[0].mxu0 %v209
        %v343 = vpop.f32.mrb[0].mxu0
        %v344 = vadd.f32 0.0, %v343
        %v345 = vpop.f32.mrb[0].mxu0
        %346 = vmatprep.mubr.f32.mxu0 0.0
        %347 = vmatmul.mubr.f32.gmra.mrb[0].mxu0 %v210
        %v348 = vpop.f32.mrb[0].mxu0
        %v349 = vadd.f32 0.0, %v348
        %v350 = vpop.f32.mrb[0].mxu0
        %351 = vmatprep.mubr.f32.mxu0 0.0
        %352 = vmatmul.mubr.f32.gmra.mrb[0].mxu0 %v211
        %v353 = vpop.f32.mrb[0].mxu0
        %v354 = vadd.f32 0.0, %v353
        %v355 = vpop.f32.mrb[0].mxu0
        %356 = vmatprep.mubr.f32.mxu0 0.0
        %357 = vmatmul.mubr.f32.gmra.mrb[0].mxu0 %v212
        %v358 = vpop.f32.mrb[0].mxu0
        %v359 = vadd.f32 0.0, %v358
        %v360 = vpop.f32.mrb[0].mxu0
        %361 = vmatprep.mubr.f32.mxu0 0.0
        %362 = vmatmul.mubr.f32.gmra.mrb[0].mxu0 %v213
        %v363 = vpop.f32.mrb[0].mxu0
        %v364 = vadd.f32 0.0, %v363
        %v365 = vpop.f32.mrb[0].mxu0
        %366 = vmatprep.mubr.f32.mxu0 0.0
        %367 = vmatmul.mubr.f32.gmra.mrb[0].mxu0 %v214
        %v368 = vpop.f32.mrb[0].mxu0
        %v369 = vadd.f32 0.0, %v368
        %v370 = vpop.f32.mrb[0].mxu0
        %371 = vmatprep.mubr.f32.mxu0 0.0
        %372 = vmatmul.mubr.f32.gmra.mrb[0].mxu0 %v215
        %v373 = vpop.f32.mrb[0].mxu0
        %v374 = vadd.f32 0.0, %v373
        %v375 = vpop.f32.mrb[0].mxu0
        %376 = vdwg.mxu0
        %s377 = smul.u32 %s23, 16
        %s378 = scalar_lea.vmem %s2, %s377
        %v379 = vld [vmem:[%s378] sm:$0xff]
        %v380 = vld [vmem:[%s378 + $0x8] sm:$0xff]
        %vm381 = vcmask 130048
        %v383 = vsel %vm381, %v299, 0
        %v386 = vsel %vm381, %v304, 0
        %v389 = vsel %vm381, %v309, 0
        %v392 = vsel %vm381, %v314, 0
        %v395 = vsel %vm381, %v319, 0
        %v398 = vsel %vm381, %v324, 0
        %v401 = vsel %vm381, %v329, 0
        %v404 = vsel %vm381, %v334, 0
        %v407 = vsel %vm381, %v339, 0
        %v410 = vsel %vm381, %v344, 0
        %v413 = vsel %vm381, %v349, 0
        %v416 = vsel %vm381, %v354, 0
        %v419 = vsel %vm381, %v359, 0
        %v422 = vsel %vm381, %v364, 0
        %v425 = vsel %vm381, %v369, 0
        %v428 = vsel %vm381, %v374, 0
        %430 = vmatprep.subr.mxu0 0.0
        %431 = vmatpush1.msra.mxu0 %v379
        %432 = vmatprep.subr.mxu0 0.0
        %433 = vmatpush1.msra.mxu0 %v380
        %434 = vmatprep.subr.mxu0 0.0
        %435 = vmatpush1.msra.mxu0 0.0
        %436 = vmatprep.subr.mxu0 0.0
        %437 = vmatpush1.msra.mxu0 0.0
        %438 = vmatprep.subr.mxu0 0.0
        %439 = vmatpush1.msra.mxu0 0.0
        %440 = vmatprep.subr.mxu0 0.0
        %441 = vmatpush1.msra.mxu0 0.0
        %442 = vmatprep.subr.mxu0 0.0
        %443 = vmatpush1.msra.mxu0 0.0
        %444 = vmatprep.subr.mxu0 0.0
        %445 = vmatpush1.msra.mxu0 0.0
        %446 = vmatprep.subr.mxu0 0.0
        %447 = vmatpush1.msra.mxu0 0.0
        %448 = vmatprep.subr.mxu0 0.0
        %449 = vmatpush1.msra.mxu0 0.0
        %450 = vmatprep.subr.mxu0 0.0
        %451 = vmatpush1.msra.mxu0 0.0
        %452 = vmatprep.subr.mxu0 0.0
        %453 = vmatpush1.msra.mxu0 0.0
        %454 = vmatprep.subr.mxu0 0.0
        %455 = vmatpush1.msra.mxu0 0.0
        %456 = vmatprep.subr.mxu0 0.0
        %457 = vmatpush1.msra.mxu0 0.0
        %458 = vmatprep.subr.mxu0 0.0
        %459 = vmatpush1.msra.mxu0 0.0
        %460 = vmatprep.subr.mxu0 0.0
        %461 = vmatpush1.msra.mxu0 0.0
        %462 = vmatprep.subr.mxu0 0.0
        %463 = vmatpush1.msra.mxu0 0.0
        %464 = vmatprep.subr.mxu0 0.0
        %465 = vmatpush1.msra.mxu0 0.0
        %466 = vmatprep.subr.mxu0 0.0
        %467 = vmatpush1.msra.mxu0 0.0
        %468 = vmatprep.subr.mxu0 0.0
        %469 = vmatpush1.msra.mxu0 0.0
        %470 = vmatprep.subr.mxu0 0.0
        %471 = vmatpush1.msra.mxu0 0.0
        %472 = vmatprep.subr.mxu0 0.0
        %473 = vmatpush1.msra.mxu0 0.0
        %474 = vmatprep.subr.mxu0 0.0
        %475 = vmatpush1.msra.mxu0 0.0
        %476 = vmatprep.subr.mxu0 0.0
        %477 = vmatpush1.msra.mxu0 0.0
        %478 = vmatprep.subr.mxu0 0.0
        %479 = vmatpush1.msra.mxu0 0.0
        %480 = vmatprep.subr.mxu0 0.0
        %481 = vmatpush1.msra.mxu0 0.0
        %482 = vmatprep.subr.mxu0 0.0
        %483 = vmatpush1.msra.mxu0 0.0
        %484 = vmatprep.subr.mxu0 0.0
        %485 = vmatpush1.msra.mxu0 0.0
        %486 = vmatprep.subr.mxu0 0.0
        %487 = vmatpush1.msra.mxu0 0.0
        %488 = vmatprep.subr.mxu0 0.0
        %489 = vmatpush1.msra.mxu0 0.0
        %490 = vmatprep.subr.mxu0 0.0
        %491 = vmatpush1.msra.mxu0 0.0
        %492 = vmatprep.subr.mxu0 0.0
        %493 = vmatpush1.msra.mxu0 0.0
        %494 = vmatprep.mubr.f32.mxu0 0.0
        %495 = vmatmul.mubr.f32.gmra.mrb[0].mxu0 %v383
        %v496 = vpop.f32.mrb[0].mxu0
        %v497 = vadd.f32 0.0, %v496
        %v498 = vpop.f32.mrb[0].mxu0
        %499 = vmatprep.mubr.f32.mxu0 0.0
        %500 = vmatmul.mubr.f32.gmra.mrb[0].mxu0 %v386
        %v501 = vpop.f32.mrb[0].mxu0
        %v502 = vadd.f32 0.0, %v501
        %v503 = vpop.f32.mrb[0].mxu0
        %504 = vmatprep.mubr.f32.mxu0 0.0
        %505 = vmatmul.mubr.f32.gmra.mrb[0].mxu0 %v389
        %v506 = vpop.f32.mrb[0].mxu0
        %v507 = vadd.f32 0.0, %v506
        %v508 = vpop.f32.mrb[0].mxu0
        %509 = vmatprep.mubr.f32.mxu0 0.0
        %510 = vmatmul.mubr.f32.gmra.mrb[0].mxu0 %v392
        %v511 = vpop.f32.mrb[0].mxu0
        %v512 = vadd.f32 0.0, %v511
        %v513 = vpop.f32.mrb[0].mxu0
        %514 = vmatprep.mubr.f32.mxu0 0.0
        %515 = vmatmul.mubr.f32.gmra.mrb[0].mxu0 %v395
        %v516 = vpop.f32.mrb[0].mxu0
        %v517 = vadd.f32 0.0, %v516
        %v518 = vpop.f32.mrb[0].mxu0
        %519 = vmatprep.mubr.f32.mxu0 0.0
        %520 = vmatmul.mubr.f32.gmra.mrb[0].mxu0 %v398
        %v521 = vpop.f32.mrb[0].mxu0
        %v522 = vadd.f32 0.0, %v521
        %v523 = vpop.f32.mrb[0].mxu0
        %524 = vmatprep.mubr.f32.mxu0 0.0
        %525 = vmatmul.mubr.f32.gmra.mrb[0].mxu0 %v401
        %v526 = vpop.f32.mrb[0].mxu0
        %v527 = vadd.f32 0.0, %v526
        %v528 = vpop.f32.mrb[0].mxu0
        %529 = vmatprep.mubr.f32.mxu0 0.0
        %530 = vmatmul.mubr.f32.gmra.mrb[0].mxu0 %v404
        %v531 = vpop.f32.mrb[0].mxu0
        %v532 = vadd.f32 0.0, %v531
        %v533 = vpop.f32.mrb[0].mxu0
        %534 = vmatprep.mubr.f32.mxu0 0.0
        %535 = vmatmul.mubr.f32.gmra.mrb[0].mxu0 %v407
        %v536 = vpop.f32.mrb[0].mxu0
        %v537 = vadd.f32 0.0, %v536
        %v538 = vpop.f32.mrb[0].mxu0
        %539 = vmatprep.mubr.f32.mxu0 0.0
        %540 = vmatmul.mubr.f32.gmra.mrb[0].mxu0 %v410
        %v541 = vpop.f32.mrb[0].mxu0
        %v542 = vadd.f32 0.0, %v541
        %v543 = vpop.f32.mrb[0].mxu0
        %544 = vmatprep.mubr.f32.mxu0 0.0
        %545 = vmatmul.mubr.f32.gmra.mrb[0].mxu0 %v413
        %v546 = vpop.f32.mrb[0].mxu0
        %v547 = vadd.f32 0.0, %v546
        %v548 = vpop.f32.mrb[0].mxu0
        %549 = vmatprep.mubr.f32.mxu0 0.0
        %550 = vmatmul.mubr.f32.gmra.mrb[0].mxu0 %v416
        %v551 = vpop.f32.mrb[0].mxu0
        %v552 = vadd.f32 0.0, %v551
        %v553 = vpop.f32.mrb[0].mxu0
        %554 = vmatprep.mubr.f32.mxu0 0.0
        %555 = vmatmul.mubr.f32.gmra.mrb[0].mxu0 %v419
        %v556 = vpop.f32.mrb[0].mxu0
        %v557 = vadd.f32 0.0, %v556
        %v558 = vpop.f32.mrb[0].mxu0
        %559 = vmatprep.mubr.f32.mxu0 0.0
        %560 = vmatmul.mubr.f32.gmra.mrb[0].mxu0 %v422
        %v561 = vpop.f32.mrb[0].mxu0
        %v562 = vadd.f32 0.0, %v561
        %v563 = vpop.f32.mrb[0].mxu0
        %564 = vmatprep.mubr.f32.mxu0 0.0
        %565 = vmatmul.mubr.f32.gmra.mrb[0].mxu0 %v425
        %v566 = vpop.f32.mrb[0].mxu0
        %v567 = vadd.f32 0.0, %v566
        %v568 = vpop.f32.mrb[0].mxu0
        %569 = vmatprep.mubr.f32.mxu0 0.0
        %570 = vmatmul.mubr.f32.gmra.mrb[0].mxu0 %v428
        %v571 = vpop.f32.mrb[0].mxu0
        %v572 = vadd.f32 0.0, %v571
        %v573 = vpop.f32.mrb[0].mxu0
        %574 = vdwg.mxu0
        %p575 = scmp.eq.s32.totalorder %s23, 0
        // Predicated region
        $region37: #{tpu_custom_call.1} parent=31 // pred_check
          %p576 = pneg %p575
        $region38: #{tpu_custom_call.1} parent=31 // pred_check_branch
          %578 = sbr.rel (%p576) target = $region40
        $region39: #{tpu_custom_call.1} parent=31 // pred_region
          %579 = vst [vmem:[#allocation5] sm:$0xff] %v497
          %580 = vst [vmem:[#allocation5 + $0x8] sm:$0xff] %v502
          %581 = vst [vmem:[#allocation5 + $0x10] sm:$0xff] %v507
          %582 = vst [vmem:[#allocation5 + $0x18] sm:$0xff] %v512
          %583 = vst [vmem:[#allocation5 + $0x20] sm:$0xff] %v517
          %584 = vst [vmem:[#allocation5 + $0x28] sm:$0xff] %v522
          %585 = vst [vmem:[#allocation5 + $0x30] sm:$0xff] %v527
          %586 = vst [vmem:[#allocation5 + $0x38] sm:$0xff] %v532
          %587 = vst [vmem:[#allocation5 + $0x40] sm:$0xff] %v537
          %588 = vst [vmem:[#allocation5 + $0x48] sm:$0xff] %v542
          %589 = vst [vmem:[#allocation5 + $0x50] sm:$0xff] %v547
          %590 = vst [vmem:[#allocation5 + $0x58] sm:$0xff] %v552
          %591 = vst [vmem:[#allocation5 + $0x60] sm:$0xff] %v557
          %592 = vst [vmem:[#allocation5 + $0x68] sm:$0xff] %v562
          %593 = vst [vmem:[#allocation5 + $0x70] sm:$0xff] %v567
          %594 = vst [vmem:[#allocation5 + $0x78] sm:$0xff] %v572
        $region40: #{tpu_custom_call.1} parent=31 // pred_fallthru
          _
        %p595 = scmp.gt.s32.totalorder %s23, 0
        %p596 = scmp.lt.s32.totalorder %s23, 2
        %p597 = pnand %p595, %p596
        %p598 = pneg %p597
        // Predicated region
        $region41: #{tpu_custom_call.1} parent=31 // pred_check
          _
        $region42: #{tpu_custom_call.1} parent=31 // pred_check_branch
          %600 = sbr.rel (%p597) target = $region44
        $region43: #{tpu_custom_call.1} parent=31 // pred_region
          %v601 = vld [vmem:[#allocation5] sm:$0xff]
          %v602 = vld [vmem:[#allocation5 + $0x8] sm:$0xff]
          %v603 = vld [vmem:[#allocation5 + $0x10] sm:$0xff]
          %v604 = vld [vmem:[#allocation5 + $0x18] sm:$0xff]
          %v605 = vld [vmem:[#allocation5 + $0x20] sm:$0xff]
          %v606 = vld [vmem:[#allocation5 + $0x28] sm:$0xff]
          %v607 = vld [vmem:[#allocation5 + $0x30] sm:$0xff]
          %v608 = vld [vmem:[#allocation5 + $0x38] sm:$0xff]
          %v609 = vld [vmem:[#allocation5 + $0x40] sm:$0xff]
          %v610 = vld [vmem:[#allocation5 + $0x48] sm:$0xff]
          %v611 = vld [vmem:[#allocation5 + $0x50] sm:$0xff]
          %v612 = vld [vmem:[#allocation5 + $0x58] sm:$0xff]
          %v613 = vld [vmem:[#allocation5 + $0x60] sm:$0xff]
          %v614 = vld [vmem:[#allocation5 + $0x68] sm:$0xff]
          %v615 = vld [vmem:[#allocation5 + $0x70] sm:$0xff]
          %v616 = vld [vmem:[#allocation5 + $0x78] sm:$0xff]
          %v617 = vadd.f32 %v601, %v497
          %v618 = vadd.f32 %v602, %v502
          %v619 = vadd.f32 %v603, %v507
          %v620 = vadd.f32 %v604, %v512
          %v621 = vadd.f32 %v605, %v517
          %v622 = vadd.f32 %v606, %v522
          %v623 = vadd.f32 %v607, %v527
          %v624 = vadd.f32 %v608, %v532
          %v625 = vadd.f32 %v609, %v537
          %v626 = vadd.f32 %v610, %v542
          %v627 = vadd.f32 %v611, %v547
          %v628 = vadd.f32 %v612, %v552
          %v629 = vadd.f32 %v613, %v557
          %v630 = vadd.f32 %v614, %v562
          %v631 = vadd.f32 %v615, %v567
          %v632 = vadd.f32 %v616, %v572
          %633 = vst [vmem:[#allocation5] sm:$0xff] %v617
          %634 = vst [vmem:[#allocation5 + $0x8] sm:$0xff] %v618
          %635 = vst [vmem:[#allocation5 + $0x10] sm:$0xff] %v619
          %636 = vst [vmem:[#allocation5 + $0x18] sm:$0xff] %v620
          %637 = vst [vmem:[#allocation5 + $0x20] sm:$0xff] %v621
          %638 = vst [vmem:[#allocation5 + $0x28] sm:$0xff] %v622
          %639 = vst [vmem:[#allocation5 + $0x30] sm:$0xff] %v623
          %640 = vst [vmem:[#allocation5 + $0x38] sm:$0xff] %v624
          %641 = vst [vmem:[#allocation5 + $0x40] sm:$0xff] %v625
          %642 = vst [vmem:[#allocation5 + $0x48] sm:$0xff] %v626
          %643 = vst [vmem:[#allocation5 + $0x50] sm:$0xff] %v627
          %644 = vst [vmem:[#allocation5 + $0x58] sm:$0xff] %v628
          %645 = vst [vmem:[#allocation5 + $0x60] sm:$0xff] %v629
          %646 = vst [vmem:[#allocation5 + $0x68] sm:$0xff] %v630
          %647 = vst [vmem:[#allocation5 + $0x70] sm:$0xff] %v631
          %648 = vst [vmem:[#allocation5 + $0x78] sm:$0xff] %v632
        $region44: #{tpu_custom_call.1} parent=31 // pred_fallthru
          _
        %p649 = scmp.eq.s32.totalorder %s23, 2
        // Predicated region
        $region45: #{tpu_custom_call.1} parent=31 // pred_check
          %p650 = pneg %p649
        $region46: #{tpu_custom_call.1} parent=31 // pred_check_branch
          %652 = sbr.rel (%p650) target = $region48
        $region47: #{tpu_custom_call.1} parent=31 // pred_region
          %v653 = vld [vmem:[#allocation5] sm:$0xff]
          %v654 = vld [vmem:[#allocation5 + $0x8] sm:$0xff]
          %v655 = vld [vmem:[#allocation5 + $0x10] sm:$0xff]
          %v656 = vld [vmem:[#allocation5 + $0x18] sm:$0xff]
          %v657 = vld [vmem:[#allocation5 + $0x20] sm:$0xff]
          %v658 = vld [vmem:[#allocation5 + $0x28] sm:$0xff]
          %v659 = vld [vmem:[#allocation5 + $0x30] sm:$0xff]
          %v660 = vld [vmem:[#allocation5 + $0x38] sm:$0xff]
          %v661 = vld [vmem:[#allocation5 + $0x40] sm:$0xff]
          %v662 = vld [vmem:[#allocation5 + $0x48] sm:$0xff]
          %v663 = vld [vmem:[#allocation5 + $0x50] sm:$0xff]
          %v664 = vld [vmem:[#allocation5 + $0x58] sm:$0xff]
          %v665 = vld [vmem:[#allocation5 + $0x60] sm:$0xff]
          %v666 = vld [vmem:[#allocation5 + $0x68] sm:$0xff]
          %v667 = vld [vmem:[#allocation5 + $0x70] sm:$0xff]
          %v668 = vld [vmem:[#allocation5 + $0x78] sm:$0xff]
          %v669 = vadd.f32 %v653, %v497
          %v670 = vadd.f32 %v654, %v502
          %v671 = vadd.f32 %v655, %v507
          %v672 = vadd.f32 %v656, %v512
          %v673 = vadd.f32 %v657, %v517
          %v674 = vadd.f32 %v658, %v522
          %v675 = vadd.f32 %v659, %v527
          %v676 = vadd.f32 %v660, %v532
          %v677 = vadd.f32 %v661, %v537
          %v678 = vadd.f32 %v662, %v542
          %v679 = vadd.f32 %v663, %v547
          %v680 = vadd.f32 %v664, %v552
          %v681 = vadd.f32 %v665, %v557
          %v682 = vadd.f32 %v666, %v562
          %v683 = vadd.f32 %v667, %v567
          %v684 = vadd.f32 %v668, %v572
          %v685 = vmax.f32 %v669, 0.0
          %v686 = vmax.f32 %v670, 0.0
          %v687 = vmax.f32 %v671, 0.0
          %v688 = vmax.f32 %v672, 0.0
          %v689 = vmax.f32 %v673, 0.0
          %v690 = vmax.f32 %v674, 0.0
          %v691 = vmax.f32 %v675, 0.0
          %v692 = vmax.f32 %v676, 0.0
          %v693 = vmax.f32 %v677, 0.0
          %v694 = vmax.f32 %v678, 0.0
          %v695 = vmax.f32 %v679, 0.0
          %v696 = vmax.f32 %v680, 0.0
          %v697 = vmax.f32 %v681, 0.0
          %v698 = vmax.f32 %v682, 0.0
          %v699 = vmax.f32 %v683, 0.0
          %v700 = vmax.f32 %v684, 0.0
          %701 = vst [vmem:[#allocation5] sm:$0xff] %v685
          %702 = vst [vmem:[#allocation5 + $0x8] sm:$0xff] %v686
          %703 = vst [vmem:[#allocation5 + $0x10] sm:$0xff] %v687
          %704 = vst [vmem:[#allocation5 + $0x18] sm:$0xff] %v688
          %705 = vst [vmem:[#allocation5 + $0x20] sm:$0xff] %v689
          %706 = vst [vmem:[#allocation5 + $0x28] sm:$0xff] %v690
          %707 = vst [vmem:[#allocation5 + $0x30] sm:$0xff] %v691
          %708 = vst [vmem:[#allocation5 + $0x38] sm:$0xff] %v692
          %709 = vst [vmem:[#allocation5 + $0x40] sm:$0xff] %v693
          %710 = vst [vmem:[#allocation5 + $0x48] sm:$0xff] %v694
          %711 = vst [vmem:[#allocation5 + $0x50] sm:$0xff] %v695
          %712 = vst [vmem:[#allocation5 + $0x58] sm:$0xff] %v696
          %713 = vst [vmem:[#allocation5 + $0x60] sm:$0xff] %v697
          %714 = vst [vmem:[#allocation5 + $0x68] sm:$0xff] %v698
          %715 = vst [vmem:[#allocation5 + $0x70] sm:$0xff] %v699
          %716 = vst [vmem:[#allocation5 + $0x78] sm:$0xff] %v700
        $region48: #{tpu_custom_call.1} parent=31 // pred_fallthru
          _
        // Predicated region
        $region49: #{tpu_custom_call.1} parent=31 // pred_check
          %p717 = pneg %p118
        $region50: #{tpu_custom_call.1} parent=31 // pred_check_branch
          %719 = sbr.rel (%p717) target = $region52
        $region51: #{tpu_custom_call.1} parent=31 // pred_region
          %s720 = smul.u32 16, %s22
          %s722 = ssub.s32 2048, 2048
          %723 = vsyncadd [#allocation4], %s722
          %s724 = smul.addr %s720, 128
          %s725 = scalar_lea.hbm %s3, %s724
          %s726 = sshll.u32 [#allocation5], 4
          %s727 = int_to_ptr.vmem [resolvable:$true] %s726
          %732 = dma.vmem_to_hbm [thread:$0]  %s727, 2048, %s725, [#allocation4], 128, 128, 8
        $region52: #{tpu_custom_call.1} parent=31 // pred_fallthru
          _
        // Predicated region
        $region53: #{tpu_custom_call.1} parent=31 // pred_check
          %p733 = pneg %p118
        $region54: #{tpu_custom_call.1} parent=31 // pred_check_branch
          %735 = sbr.rel (%p733) target = $region56
        $region55: #{tpu_custom_call.1} parent=31 // pred_region
          %736 = dma.done [#allocation4], 2048
        $region56: #{tpu_custom_call.1} parent=31 // pred_fallthru
          _
      $region32: #{tpu_custom_call.1} parent=5 // pred_fallthru
        _
      %p737 = scmp.le.s32.totalorder 2, %s13
      // Predicated region
      $region57: #{tpu_custom_call.1} parent=5 // pred_check
        %p738 = pneg %p737
      $region58: #{tpu_custom_call.1} parent=5 // pred_check_branch
        %740 = sbr.rel (%p738) target = $region60
      $region59: #{tpu_custom_call.1} parent=5 // pred_region
        %s741 = ssub.s32 %s13, 2
      $region60: #{tpu_custom_call.1} parent=5 // pred_fallthru
        _
    $region6: #{tpu_custom_call.1} parent=1 // loop_footer
      %s17 = sadd.s32 1, %s13
    $region7: #{tpu_custom_call.1} parent=1 // loop_footer_branch
      %12 = sbr.rel target = $region3
    $region8: #{tpu_custom_call.1} parent=1 // loop_exit
      _
    %742 = vsyncpa [#allocation3], 1
    %s743 = scalar_lea.sflag [#allocation3], 1
    %744 = vsyncpa %s743, 1
    %745 = vsyncpa [#allocation4], 1
    %s746 = scalar_lea.sflag [#allocation4], 1
    %747 = vsyncpa %s746, 1

</llo_original>
